<compile_context>
chip_gen: v6e
topology: v6e:2x2x1
jax: 0.10.0
libtpu: 0.0.40
codegen_flags: <defaults>
</compile_context>

<pallas_src>
import math

import numpy as np

import jax
import jax.numpy as jnp
from jax.experimental import pallas as pl
from jax.experimental.pallas import tpu as pltpu


# ---------------------------------------------------------------------------
# Kernel: first-spike-time map.
# ---------------------------------------------------------------------------
def _ttfs_fst_kernel(th_ref,    # SMEM [T]       prefetched thresholds (f32)
                     mem_ref,   # VMEM [TR, F]   initial membrane tile (resident over t)
                     fst_ref):  # VMEM [TR, F]   first-spike time (int32, -1 = never)
    """One (row_tile, t) grid step.

    `fst_ref`'s index_map is constant over the t axis, so it is a VMEM-resident
    accumulator written back to HBM once per row tile. Reset-by-zero + th > 0
    implies each element fires at most once, so `fire` is derived from the
    *initial* membrane value and the not-yet-fired mask.
    """
    t = pl.program_id(1)

    @pl.when(t == 0)
    def _init():
        fst_ref[...] = jnp.full(fst_ref.shape, -1, dtype=jnp.int32)

    th = th_ref[t]
    fst = fst_ref[...]
    fire = jnp.logical_and(
        jnp.logical_and(mem_ref[...] >= th, th >= jnp.float32(1e-5)),
        fst < 0)
    fst_ref[...] = jnp.where(fire, t, fst)


# ---------------------------------------------------------------------------
# Tiling / VMEM sizing helpers
# ---------------------------------------------------------------------------
def _round_up(x, m):
    return ((x + m - 1) // m) * m


def _tile_footprint_bytes(tr, f):
    # mem input tile + fst output tile, both double-buffered, 4 B / element.
    return 4 * tr * f * 4


def _vmem_budget_and_limit():
    """Per-generation VMEM sizing (128 MiB parts vs v7x's 64 MiB)."""
    cap = 64 << 20
    try:
        cap = int(getattr(pltpu.get_tpu_info(), "vmem_capacity_bytes", cap)) or cap
    except Exception:
        pass
    if cap >= (100 << 20):              # v5e / v6e: 128 MiB physical
        return 80 << 20, 100 << 20
    return 24 << 20, 40 << 20           # v7x (64 MiB physical) / unknown


def _choose_row_tile(r_pad, f_pad, budget_bytes):
    """Largest multiple-of-8 row tile dividing r_pad that fits the budget,
    capped at r_pad // 2 when r_pad >= 16 so the 'parallel' row axis always has
    >= 2 tiles (keeps both v7x TensorCores busy)."""
    cands = [d for d in range(8, r_pad + 1, 8) if r_pad % d == 0]
    if r_pad >= 16:
        cands = [d for d in cands if d <= r_pad // 2] or [8]
    fitting = [d for d in cands if _tile_footprint_bytes(d, f_pad) <= budget_bytes]
    return max(fitting) if fitting else min(cands)


# ---------------------------------------------------------------------------
# Fused launcher: one pallas_call for all (active) simulation steps
# ---------------------------------------------------------------------------
def ttfs_first_spike_time(mem, th_table, *, row_tile=None):
    """Compute the first-spike-time map for the whole simulation.

    mem      : [R, F] float32 initial membrane potential
    th_table : [T]    float32 (host / numpy) threshold per simulation step
    Returns fst [R, F] int32, -1 where the element never fires.
    """
    mem = jnp.asarray(mem, dtype=jnp.float32)
    if mem.ndim != 2:
        raise ValueError("TTFS expects a 2-D [data_steps, features] input.")
    R, F = mem.shape
    th = np.asarray(th_table, dtype=np.float32).reshape(-1)

    # Trim dead tail steps (th < 1e-5): nothing can fire there.
    active = np.nonzero(th >= np.float32(1e-5))[0]
    t_active = int(active[-1]) + 1 if active.size else 0
    if t_active == 0 or R == 0 or F == 0:
        return jnp.full((R, F), -1, dtype=jnp.int32)
    th = th[:t_active]

    # Pad to lane-dense, (8,128)-tileable shapes. Zero padding never fires
    # (thresholds are >= 1e-5 > 0), so results just get sliced back.
    f_pad = _round_up(F, 128)
    r_pad = _round_up(R, 8)
    mem_p = mem
    if f_pad != F or r_pad != R:
        mem_p = jnp.pad(mem, ((0, r_pad - R), (0, f_pad - F)))

    budget, vmem_limit = _vmem_budget_and_limit()
    if row_tile is not None and row_tile % 8 == 0 and r_pad % row_tile == 0:
        tr = int(row_tile)
    else:
        tr = _choose_row_tile(r_pad, f_pad, budget)
    num_row_tiles = r_pad // tr
    vmem_limit = max(vmem_limit, _tile_footprint_bytes(tr, f_pad) + (4 << 20))

    grid_spec = pltpu.PrefetchScalarGridSpec(
        num_scalar_prefetch=1,
        grid=(num_row_tiles, t_active),
        in_specs=[pl.BlockSpec((tr, f_pad), lambda i, t, th_ref: (i, 0))],
        out_specs=pl.BlockSpec((tr, f_pad), lambda i, t, th_ref: (i, 0)),
    )

    fst = pl.pallas_call(
        _ttfs_fst_kernel,
        out_shape=jax.ShapeDtypeStruct((r_pad, f_pad), jnp.int32),
        grid_spec=grid_spec,
        compiler_params=pltpu.CompilerParams(
            # Row tiles shard across TensorCores (v7x megacore); t carries the
            # fst accumulator -> arbitrary.
            dimension_semantics=("parallel", "arbitrary"),
            vmem_limit_bytes=int(vmem_limit),
        ),
    )(jnp.asarray(th), mem_p)

    if f_pad != F or r_pad != R:
        fst = fst[:R, :F]
    return fst


def ttfs_encode_steps(mem, th_table, *, row_tile=None):
    """Convenience: full simulation, dense outputs reconstructed OUTSIDE the
    kernel from the first-spike-time map (spikes are only materialized here,
    never written by the kernel).

    Returns (spikes [T,R,F] f32, final_mem [R,F] f32,
             num_spike [R,T] f32, first_spike_time [R,F] int32).
    """
    mem = jnp.asarray(mem, dtype=jnp.float32)
    th = np.asarray(th_table, dtype=np.float32).reshape(-1)
    T = int(th.shape[0])
    fst = ttfs_first_spike_time(mem, th, row_tile=row_tile)
    steps = jnp.arange(T, dtype=jnp.int32)
    spikes = (fst[None, :, :] == steps[:, None, None]).astype(jnp.float32)  # [T,R,F]
    counts = jnp.sum(spikes, axis=2).T                                      # [R,T]
    final_mem = jnp.where(fst >= 0, jnp.float32(0.0), mem)
    return spikes, final_mem, counts, fst


def _make_th_table(num_steps, t_d, init_th, tau):
    # Host-side math.exp matches the per-step torch semantics bit-for-bit.
    return np.asarray(
        [init_th * math.exp(-(t - t_d) / tau) for t in range(num_steps)],
        dtype=np.float32)


def ttfs_encode_all(data, num_steps, t_d=0, init_th=1.0, tau=5.0, row_tile=None):
    return ttfs_encode_steps(data, _make_th_table(num_steps, t_d, init_th, tau),
                             row_tile=row_tile)


# ---------------------------------------------------------------------------
# Stateful module (PyTorch-API port)
# ---------------------------------------------------------------------------
class TTFS:
    """JAX/Pallas port of the stateful PyTorch TTFS module.

    If `num_sim_steps` is given, the whole simulation is computed in a single
    fused Pallas call at t == 0 (membrane + first-spike-time stay VMEM-resident
    across all steps); per-step forward() calls derive spikes / counts / mem
    from the cached first-spike-time map. Otherwise each forward() call runs a
    T=1 instance of the same kernel, with a host-side early-out once the
    threshold has decayed below 1e-5.
    """

    def __init__(self, data_num_steps, t_d=0, init_th=1.0, tau=5.0,
                 num_sim_steps=None, row_tile=None):
        self.t_d = t_d
        self.init_th = float(init_th)
        self.tau = float(tau)
        self.th = 0.0
        self.num_sim_steps = num_sim_steps
        self.row_tile = row_tile
        # Matches torch: self.mem = torch.zeros(data_num_steps) (1-D; replaced
        # by the 2-D input at t == 0).
        self.mem = jnp.zeros((data_num_steps,), dtype=jnp.float32)
        self.num_spike = None
        self.output = None
        self._steps = []          # t values seen so far (for get_fire_time)
        self._fst = None          # running / full first-spike-time map
        self._fused_fst = None
        self._data0 = None

    def encoding_kernel(self, t):
        time = t - self.t_d
        self.th = self.init_th * math.exp(-time / self.tau)

    def ttfs_encode(self, data, t):
        if t == 0:
            self.mem = jnp.asarray(data, dtype=jnp.float32)
            self.th = 0.0
            self._steps = []
            self._fused_fst = None
            self._data0 = self.mem
        if self.mem.ndim != 2:
            raise ValueError(
                "TTFS membrane state is not 2-D; the first call must be t == 0 "
                "so that `mem` is initialized from the 2-D input.")
        if t == 0:
            self._fst = jnp.full(self.mem.shape, -1, dtype=jnp.int32)
        self.encoding_kernel(t)

        if self.num_sim_steps is not None:
            # ---- fused path: one pallas_call for the whole simulation -------
            if self._fused_fst is None:
                if t != 0:
                    raise ValueError("first call must use t == 0")
                self._fused_fst = ttfs_first_spike_time(
                    self._data0,
                    _make_th_table(self.num_sim_steps, self.t_d,
                                   self.init_th, self.tau),
                    row_tile=self.row_tile)
                self._fst = self._fused_fst
            assert t < self.num_sim_steps, "t exceeds num_sim_steps"
            fst = self._fused_fst
            out = (fst == t).astype(jnp.float32)
            self.num_spike = jnp.sum(out, axis=1)
            # Membrane after step t (reset-by-zero; elements fire once).
            fired_by_t = jnp.logical_and(fst >= 0, fst <= t)
            self.mem = jnp.where(fired_by_t, jnp.float32(0.0), self._data0)
        else:
            # ---- per-step path ----------------------------------------------
            if self.th >= 1e-5:
                fst1 = ttfs_first_spike_time(
                    self.mem, np.asarray([self.th], dtype=np.float32),
                    row_tile=self.row_tile)
                fired = fst1 == 0
                out = fired.astype(jnp.float32)
                self.mem = jnp.where(fired, jnp.float32(0.0), self.mem)
                self._fst = jnp.where(jnp.logical_and(fired, self._fst < 0),
                                      t, self._fst)
            else:
                # Host-side early-out: decayed threshold, nothing can fire.
                out = jnp.zeros_like(self.mem)
            self.num_spike = jnp.sum(out, axis=1)

        self.output = out
        self._steps.append(t)
        return out

    def get_fire_time(self):
        # Deferred off the hot path: only the compact fst map is kept;
        # data-dependent-size index extraction (torch.where) happens on demand.
        # TODO(synk): jnp.nonzero has data-dependent output size, so it cannot
        # live inside the Pallas kernel; it is computed here from `fst`.
        if self._fst is None:
            return []
        return [jnp.nonzero(self._fst == t) for t in self._steps]

    def forward(self, input, t):
        return self.ttfs_encode(input, t)

    __call__ = forward

    def count_spike(self):
        return self.num_spike


# ---------------------------------------------------------------------------
# Pure-jnp reference of the torch semantics (for validation)
# ---------------------------------------------------------------------------
def _reference_steps(data, th_table):
    mem = jnp.asarray(data, dtype=jnp.float32)
    th_table = np.asarray(th_table, dtype=np.float32)
    outs, counts = [], []
    fst = jnp.full(mem.shape, -1, dtype=jnp.int32)
    for t in range(th_table.shape[0]):
        th = th_table[t]
        if th >= np.float32(1e-5):
            fire = mem >= jnp.float32(th)
        else:
            fire = jnp.zeros(mem.shape, dtype=bool)
        out = fire.astype(jnp.float32)
        fst = jnp.where(jnp.logical_and(fire, fst < 0), t, fst)
        mem = jnp.where(fire, 0.0, mem)
        outs.append(out)
        counts.append(jnp.sum(out, axis=1))
    return outs, counts, mem, fst


if __name__ == "__main__":
    key = jax.random.PRNGKey(0)
    R, F = 8, 128          # rows = "data time steps", features (sum(dim=1) axis)
    T = 6                  # simulation steps
    x = jax.random.uniform(key, (R, F), dtype=jnp.float32)
    th_tab = _make_th_table(T, 0, 1.0, 5.0)
    ref_outs, ref_counts, ref_mem, ref_fst = _reference_steps(x, th_tab)

    # ---- (a) fused kernel, aligned shapes ----------------------------------
    spikes, final_mem, counts, fst = ttfs_encode_all(x, T)
    jax.block_until_ready((spikes, final_mem, counts, fst))
    assert jnp.array_equal(spikes, jnp.stack(ref_outs)), "spike mismatch"
    assert jnp.array_equal(counts, jnp.stack(ref_counts, axis=1)), "count mismatch"
    assert jnp.allclose(final_mem, ref_mem), "final membrane mismatch"
    assert jnp.array_equal(fst, ref_fst), "first-spike-time mismatch"

    # Long run: exercises the dead-tail trimming (th < 1e-5 past t ~ 58).
    T_long = 64
    th_long = _make_th_table(T_long, 0, 1.0, 5.0)
    spikes_l, _, counts_l, _ = ttfs_encode_steps(x, th_long)
    ref_outs_l, ref_counts_l, _, _ = _reference_steps(x, th_long)
    assert jnp.array_equal(spikes_l, jnp.stack(ref_outs_l)), "long-run spikes"
    assert jnp.array_equal(counts_l, jnp.stack(ref_counts_l, axis=1)), "long-run counts"

    # ---- (b) unaligned shapes (padding path) --------------------------------
    R2, F2 = 10, 96
    x2 = jax.random.uniform(jax.random.PRNGKey(1), (R2, F2), dtype=jnp.float32)
    sp2, fm2, cn2, fs2 = ttfs_encode_steps(x2, th_tab)
    r_outs2, r_counts2, r_mem2, r_fst2 = _reference_steps(x2, th_tab)
    assert jnp.array_equal(sp2, jnp.stack(r_outs2)), "unaligned spikes"
    assert jnp.array_equal(cn2, jnp.stack(r_counts2, axis=1)), "unaligned counts"
    assert jnp.allclose(fm2, r_mem2), "unaligned final mem"
    assert jnp.array_equal(fs2, r_fst2), "unaligned fst"

    # ---- (c) stateful module API: fused (cached) and per-step modes ---------
    for num_sim_steps in (T, None):
        enc = TTFS(data_num_steps=R, t_d=0, init_th=1.0, tau=5.0,
                   num_sim_steps=num_sim_steps)
        o = None
        for t in range(T):
            o = enc(x, t)
            assert jnp.array_equal(o, ref_outs[t]), (num_sim_steps, t)
            assert jnp.array_equal(enc.count_spike(), ref_counts[t]), (num_sim_steps, t)
        assert jnp.allclose(enc.mem, ref_mem), ("mem state", num_sim_steps)
        ft = enc.get_fire_time()
        for t in range(T):
            ref_ft = jnp.nonzero(ref_outs[t] == 1.0)
            assert all(jnp.array_equal(a, b) for a, b in zip(ft[t], ref_ft)), \
                ("fire_time", num_sim_steps, t)
        jax.block_until_ready(o)

    print("KERNEL_OK")
</pallas_src>

<mosaic_0001>
module attributes {stable_mosaic.version = 11 : i64} {
  func.func @_ttfs_fst_kernel(%arg0: i32, %arg1: i32, %arg2: memref<6xf32, #tpu.memory_space<smem>>, %arg3: memref<8x128xf32, #tpu.memory_space<vmem>>, %arg4: memref<8x128xi32, #tpu.memory_space<vmem>>) attributes {dimension_semantics = [#tpu.dimension_semantics<parallel>, #tpu.dimension_semantics<arbitrary>], iteration_bounds = array<i64: 1, 6>, scalar_prefetch = 1 : i64, scratch_operands = 0 : i64, tpu.core_type = #tpu.core_type<tc>, window_params = [{transform_indices = @transform_0, window_bounds = array<i64: 8, 128>}, {transform_indices = @transform_1, window_bounds = array<i64: 8, 128>}]} {
    %c0_i32 = arith.constant 0 : i32
    %0 = arith.cmpi eq, %arg1, %c0_i32 : i32
    %1 = arith.extui %0 : i1 to i32
    %c0_i32_0 = arith.constant 0 : i32
    %2 = arith.cmpi ne, %1, %c0_i32_0 : i32
    scf.if %2 {
      %c-1_i32 = arith.constant -1 : i32
      %18 = vector.broadcast %c-1_i32 : i32 to vector<8x128xi32>
      %c0_7 = arith.constant 0 : index
      %c0_8 = arith.constant 0 : index
      %19 = vector.load %arg4[%c0_7, %c0_8] : memref<8x128xi32, #tpu.memory_space<vmem>>, vector<8x128xi32>
      tpu.vector_store %arg4[%c0_7, %c0_8], %18 {strides = array<i32>} : memref<8x128xi32, #tpu.memory_space<vmem>>, vector<8x128xi32>,
    } else {
    }
    %3 = arith.index_cast %arg1 : i32 to index
    %4 = memref.load %arg2[%3] : memref<6xf32, #tpu.memory_space<smem>>
    %c0 = arith.constant 0 : index
    %c0_1 = arith.constant 0 : index
    %5 = vector.load %arg4[%c0, %c0_1] : memref<8x128xi32, #tpu.memory_space<vmem>>, vector<8x128xi32>
    %c0_2 = arith.constant 0 : index
    %c0_3 = arith.constant 0 : index
    %6 = vector.load %arg3[%c0_2, %c0_3] : memref<8x128xf32, #tpu.memory_space<vmem>>, vector<8x128xf32>
    %7 = vector.broadcast %4 : f32 to vector<8x128xf32>
    %8 = arith.cmpf oge, %6, %7 : vector<8x128xf32>
    %cst = arith.constant 9.99999974E-6 : f32
    %9 = arith.cmpf oge, %4, %cst : f32
    %10 = vector.broadcast %9 : i1 to vector<8x128xi1>
    %11 = arith.andi %8, %10 : vector<8x128xi1>
    %c0_i32_4 = arith.constant 0 : i32
    %12 = vector.broadcast %c0_i32_4 : i32 to vector<8x128xi32>
    %13 = arith.cmpi slt, %5, %12 : vector<8x128xi32>
    %14 = arith.andi %11, %13 : vector<8x128xi1>
    %15 = vector.broadcast %arg1 : i32 to vector<8x128xi32>
    %16 = arith.select %14, %15, %5 : vector<8x128xi1>, vector<8x128xi32>
    %c0_5 = arith.constant 0 : index
    %c0_6 = arith.constant 0 : index
    %17 = vector.load %arg4[%c0_5, %c0_6] : memref<8x128xi32, #tpu.memory_space<vmem>>, vector<8x128xi32>
    tpu.vector_store %arg4[%c0_5, %c0_6], %16 {strides = array<i32>} : memref<8x128xi32, #tpu.memory_space<vmem>>, vector<8x128xi32>,
    return
  }
  func.func @transform_0(%arg0: i32, %arg1: i32, %arg2: memref<6xf32, #tpu.memory_space<smem>>) -> (i32, i32) {
    %c0_i32 = arith.constant 0 : i32
    %c0_i32_0 = arith.constant 0 : i32
    return %arg0, %c0_i32 : i32, i32
  }
  func.func @transform_1(%arg0: i32, %arg1: i32, %arg2: memref<6xf32, #tpu.memory_space<smem>>) -> (i32, i32) {
    %c0_i32 = arith.constant 0 : i32
    %c0_i32_0 = arith.constant 0 : i32
    return %arg0, %c0_i32 : i32, i32
  }
}

</mosaic_0001>

<llo_original>
// kernel: tpu_custom_call.1
$region0: #{tpu_custom_call.1}
  #allocation0 [shape = 'u32[]', space=smem, size = 0x4, offset = 0x4, fixed_abs, tag = 'smem constant byte address 0x4 - core index']
  #allocation1 [shape = 'u32[144,128]{1,0:T(1,128)}', space=vmem, size = 0x12000, scoped, tag = 'internal scratch']
  #allocation2 [shape = 's32[1]{0}', space=sflag, size = 0x4, scoped, tag = 'scoped memory for tpu_custom_call.1']
  #allocation3 [shape = 'u8[512]{0}', space=smem, size = 0x200, scoped, tag = 'prefetched SMEM operand 0']
  %s0 = inlined_call_operand.hbm [shape: f32[6], index: 0, kind: input, shape index: {}]
  %s1 = inlined_call_operand.hbm [shape: f32[8,128], index: 1, kind: input, shape index: {}]
  %s2 = inlined_call_operand.hbm [shape: s32[8,128], index: 2, kind: output, shape index: {}]
  %s3 = sld [smem:[#allocation0]]
  $region45: #{tpu_custom_call.1} parent=0
    _
  %s5 = ssub.s32 1, %s3
  %s6 = scalar_select 0, %s5, %s3
  %8 = dma.hbm_to_smem %s0, 16, [#allocation3], [#allocation2]
  %9 = dma.done [#allocation2], 16
  %10 = sfence
  $region1: #{tpu_custom_call.1} parent=0
    #allocation4 [shape = 'u8[4096]{0}', space=vmem, size = 0x1000, scoped, tag = 'input window, operand 1, single buffered']
    #allocation5 [shape = 's32[2]{0}', space=sflag, size = 0x8, scoped, tag = 'scoped memory for tpu_custom_call.1']
    #allocation6 [shape = 's32[2]{0}', space=sflag, size = 0x8, scoped, tag = 'scoped memory for tpu_custom_call.1']
    #allocation7 [shape = 'u8[4096]{0}', space=vmem, size = 0x1000, scoped, tag = 'output window, operand 0, single buffered']
    %11 = vsyncpa [#allocation5], 0
    %12 = vsyncpa [#allocation6], 0
    loop: start=0, step=1, limit=8
    $region2: #{tpu_custom_call.1} parent=1 // loop_pre_header
      _
    $region3: #{tpu_custom_call.1} parent=1 // loop_header
      %s14 = sphi 0, %s18
      %p15 = scmp.ge.s32.totalorder %s14, 8
      %s21 = sphi 0, %s33
      %s22 = sphi 0, %s29
      %s23 = sphi 0, %s21
      %s24 = sphi 0, %s22
      %s25 = sphi 0, %s23
      %s26 = sphi 0, %s24
      %s36 = sphi 0, %s38
      %s39 = sphi 0, %s36
      %s40 = sphi 0, %s39
      %s56 = sphi 0, %s40
      %s62 = sphi 0, %s64
      %s65 = sphi 0, %s62
      %s66 = sphi 0, %s65
      %s82 = sphi 0, %s66
    $region4: #{tpu_custom_call.1} parent=1 // loop_header_branch
      %17 = sbr.rel (%p15) target = $region8
    $region5: #{tpu_custom_call.1} parent=1 // loop_body
      %s19 = ssub.s32 %s14, 1
      %s20 = ssub.s32 %s14, 2
      %s27 = sadd.s32 1, %s22
      %p28 = scmp.ge.s32.totalorder %s27, 6
      %s29 = scalar_select %p28, 0, %s27
      %s30 = sadd.s32 1, %s21
      %s31 = scalar_select %p28, %s30, %s21
      %p32 = scmp.ge.s32.totalorder %s31, 1
      %s33 = scalar_select %p32, 0, %s31
      %s34 = ssub.s32 %s21, %s33
      %p35 = scmp.eq.s32.totalorder %s34, 0
      %s37 = sadd.s32 %s36, 1
      %s38 = scalar_select %p35, %s36, %s37
      %p41 = pneg %p35
      %p42 = scmp.eq.s32.totalorder %s14, 5
      %p43 = por %p41, %p42
      %p44 = scmp.ne.s32.totalorder %s36, %s39
      %p45 = scmp.eq.s32.totalorder %s14, 0
      %p46 = por %p44, %p45
      %p47 = scmp.ne.s32.totalorder %s36, %s39
      %p48 = scmp.eq.s32.totalorder %s19, 5
      %p49 = por %p47, %p48
      %p50 = scmp.ne.s32.totalorder %s39, %s40
      %p51 = scmp.eq.s32.totalorder %s19, 0
      %p52 = por %p50, %p51
      %p53 = scmp.ne.s32.totalorder %s39, %s40
      %p54 = scmp.eq.s32.totalorder %s20, 5
      %p55 = por %p53, %p54
      %p57 = scmp.ne.s32.totalorder %s40, %s56
      %p58 = scmp.eq.s32.totalorder %s20, 0
      %p59 = por %p57, %p58
      %s60 = ssub.s32 %s21, %s33
      %p61 = scmp.eq.s32.totalorder %s60, 0
      %s63 = sadd.s32 %s62, 1
      %s64 = scalar_select %p61, %s62, %s63
      %p67 = pneg %p61
      %p68 = scmp.eq.s32.totalorder %s14, 5
      %p69 = por %p67, %p68
      %p70 = scmp.ne.s32.totalorder %s62, %s65
      %p71 = scmp.eq.s32.totalorder %s14, 0
      %p72 = por %p70, %p71
      %p73 = scmp.ne.s32.totalorder %s62, %s65
      %p74 = scmp.eq.s32.totalorder %s19, 5
      %p75 = por %p73, %p74
      %p76 = scmp.ne.s32.totalorder %s65, %s66
      %p77 = scmp.eq.s32.totalorder %s19, 0
      %p78 = por %p76, %p77
      %p79 = scmp.ne.s32.totalorder %s65, %s66
      %p80 = scmp.eq.s32.totalorder %s20, 5
      %p81 = por %p79, %p80
      %p83 = scmp.ne.s32.totalorder %s66, %s82
      %p84 = scmp.eq.s32.totalorder %s20, 0
      %p85 = por %p83, %p84
      %p86 = scmp.le.s32.totalorder 1, %s14
      %p87 = scmp.lt.s32.totalorder %s14, 7
      %p88 = pnand %p86, %p87
      %p89 = pneg %p88
      // Predicated region
      $region9: #{tpu_custom_call.1} parent=5 // pred_check
        _
      $region10: #{tpu_custom_call.1} parent=5 // pred_check_branch
        %91 = sbr.rel (%p88) target = $region12
      $region11: #{tpu_custom_call.1} parent=5 // pred_region
        %s92 = ssub.s32 %s14, 1
        // Predicated region
        $region13: #{tpu_custom_call.1} parent=11 // pred_check
          %p93 = pneg %p52
        $region14: #{tpu_custom_call.1} parent=11 // pred_check_branch
          %95 = sbr.rel (%p93) target = $region16
        $region15: #{tpu_custom_call.1} parent=11 // pred_region
          %s97 = ssub.s32 128, 128
          %98 = vsyncadd [#allocation5], %s97
          %s99 = smul.addr %s23, 128
          %s100 = scalar_lea.hbm %s1, %s99
          %s102 = sshll.u32 [#allocation4], 4
          %s103 = int_to_ptr.vmem [resolvable:$true] %s102
          %105 = dma.hbm_to_vmem [thread:$0]  %s100, 128, %s103, [#allocation5]
        $region16: #{tpu_custom_call.1} parent=11 // pred_fallthru
          _
      $region12: #{tpu_custom_call.1} parent=5 // pred_fallthru
        _
      %p106 = scmp.lt.s32.totalorder %s14, 6
      // Predicated region
      $region17: #{tpu_custom_call.1} parent=5 // pred_check
        %p107 = pneg %p106
      $region18: #{tpu_custom_call.1} parent=5 // pred_check_branch
        %109 = sbr.rel (%p107) target = $region20
      $region19: #{tpu_custom_call.1} parent=5 // pred_region
        _
      $region20: #{tpu_custom_call.1} parent=5 // pred_fallthru
        _
      %p110 = scmp.le.s32.totalorder 1, %s14
      %p111 = scmp.lt.s32.totalorder %s14, 7
      %p112 = pnand %p110, %p111
      %p113 = pneg %p112
      // Predicated region
      $region21: #{tpu_custom_call.1} parent=5 // pred_check
        _
      $region22: #{tpu_custom_call.1} parent=5 // pred_check_branch
        %115 = sbr.rel (%p112) target = $region24
      $region23: #{tpu_custom_call.1} parent=5 // pred_region
        %s116 = ssub.s32 %s14, 1
        // Predicated region
        $region25: #{tpu_custom_call.1} parent=23 // pred_check
          %p117 = pneg %p52
        $region26: #{tpu_custom_call.1} parent=23 // pred_check_branch
          %119 = sbr.rel (%p117) target = $region28
        $region27: #{tpu_custom_call.1} parent=23 // pred_region
          %120 = dma.done [#allocation5], 128
        $region28: #{tpu_custom_call.1} parent=23 // pred_fallthru
          _
        %p121 = pneg %p52
        %p122 = pneg %p49
        %p123 = pneg %p78
        %p124 = pneg %p75
        %p125 = scmp.eq.s32.totalorder %s24, 0
        // Predicated region
        $region29: #{tpu_custom_call.1} parent=23 // pred_check
          %p126 = pneg %p125
        $region30: #{tpu_custom_call.1} parent=23 // pred_check_branch
          %128 = sbr.rel (%p126) target = $region32
        $region31: #{tpu_custom_call.1} parent=23 // pred_region
          %129 = vst [vmem:[#allocation7] sm:$0xff] 4294967295
        $region32: #{tpu_custom_call.1} parent=23 // pred_fallthru
          _
        %s130 = sld [smem:[#allocation3 + %s24]]
        %v131 = vld [vmem:[#allocation7] sm:$0xff]
        %v132 = vld [vmem:[#allocation4] sm:$0xff]
        %v133 = vstv %s130
        %vm134 = vcmp.ge.f32.partialorder %v132, %v133
        %p135 = scmp.ge.f32.partialorder %s130, 1e-05
        %s136 = scalar_select %p135, 1, 0
        %v137 = vstv %s136
        %vm138 = vcmp.eq.s32.totalorder %v137, 1
        %vm139 = vmand %vm134, %vm138
        %vm140 = vcmp.lt.s32.totalorder %v131, 0
        %vm141 = vmand %vm139, %vm140
        %v142 = vstv %s24
        %v143 = vsel %vm141, %v142, %v131
        %144 = vst [vmem:[#allocation7] sm:$0xff] %v143
        // Predicated region
        $region33: #{tpu_custom_call.1} parent=23 // pred_check
          %p145 = pneg %p75
        $region34: #{tpu_custom_call.1} parent=23 // pred_check_branch
          %147 = sbr.rel (%p145) target = $region36
        $region35: #{tpu_custom_call.1} parent=23 // pred_region
          %s149 = ssub.s32 128, 128
          %150 = vsyncadd [#allocation6], %s149
          %s151 = smul.addr %s23, 128
          %s152 = scalar_lea.hbm %s2, %s151
          %s154 = sshll.u32 [#allocation7], 4
          %s155 = int_to_ptr.vmem [resolvable:$true] %s154
          %157 = dma.vmem_to_hbm [thread:$0]  %s155, 128, %s152, [#allocation6]
        $region36: #{tpu_custom_call.1} parent=23 // pred_fallthru
          _
        // Predicated region
        $region37: #{tpu_custom_call.1} parent=23 // pred_check
          %p158 = pneg %p75
        $region38: #{tpu_custom_call.1} parent=23 // pred_check_branch
          %160 = sbr.rel (%p158) target = $region40
        $region39: #{tpu_custom_call.1} parent=23 // pred_region
          %161 = dma.done [#allocation6], 128
        $region40: #{tpu_custom_call.1} parent=23 // pred_fallthru
          _
      $region24: #{tpu_custom_call.1} parent=5 // pred_fallthru
        _
      %p162 = scmp.le.s32.totalorder 2, %s14
      // Predicated region
      $region41: #{tpu_custom_call.1} parent=5 // pred_check
        %p163 = pneg %p162
      $region42: #{tpu_custom_call.1} parent=5 // pred_check_branch
        %165 = sbr.rel (%p163) target = $region44
      $region43: #{tpu_custom_call.1} parent=5 // pred_region
        %s166 = ssub.s32 %s14, 2
      $region44: #{tpu_custom_call.1} parent=5 // pred_fallthru
        _
    $region6: #{tpu_custom_call.1} parent=1 // loop_footer
      %s18 = sadd.s32 1, %s14
    $region7: #{tpu_custom_call.1} parent=1 // loop_footer_branch
      %13 = sbr.rel target = $region3
    $region8: #{tpu_custom_call.1} parent=1 // loop_exit
      _
    %167 = vsyncpa [#allocation5], 1
    %s168 = scalar_lea.sflag [#allocation5], 1
    %169 = vsyncpa %s168, 1
    %170 = vsyncpa [#allocation6], 1
    %s171 = scalar_lea.sflag [#allocation6], 1
    %172 = vsyncpa %s171, 1

</llo_original>
